<compile_context>
chip_gen: v7x
topology: tpu7x:2x2x1
jax: 0.10.0
libtpu: 0.0.40
codegen_flags: <defaults>
</compile_context>

<pallas_src>
import functools

import jax
import jax.numpy as jnp
from jax.experimental import pallas as pl
from jax.experimental.pallas import tpu as pltpu


def _round_up(x, m):
    return ((x + m - 1) // m) * m


def _default_num_partials():
    # 2-way row split only on multi-TensorCore chips (v7x); 1 elsewhere.
    try:
        kind = jax.devices()[0].device_kind.lower()
    except Exception:
        return 1
    return 2 if "v7" in kind else 1


def _focal_loss_kernel(x_ref, t_ref, o_ref, *, gamma, n_rows, tm, acc_rows,
                       tiles_per_part, needs_mask):
    j = pl.program_id(1)

    # The (acc_rows, C) output block is resident across the reduction axis j
    # and is used directly as the accumulator (P3 pattern).
    @pl.when(j == 0)
    def _():
        o_ref[...] = jnp.zeros_like(o_ref)

    x = x_ref[...].astype(jnp.float32)   # (tm, C) tile of logits
    t = t_ref[...].astype(jnp.float32)   # (tm, C) tile of targets

    # Numerically-stable BCE-with-logits (matches torch's formulation):
    #   max(x, 0) - x * t + log1p(exp(-|x|))
    e = jnp.exp(-jnp.abs(x))                                 # EUP exp
    bce = jnp.maximum(x, 0.0) - x * t + jnp.log1p(e)         # EUP log1p
    pt = jnp.exp(-bce)                                       # EUP exp
    omp = 1.0 - pt

    g = float(gamma)
    if g == 2.0:
        w = omp * omp                                        # 1 VPU mul, no pow
    elif g == 1.0:
        w = omp
    elif g == 0.0:
        w = jnp.ones_like(omp)
    elif g == int(g) and 0.0 < g <= 8.0:
        w = omp
        for _ in range(int(g) - 1):
            w = w * omp
    else:
        w = omp ** g                                         # fallback only

    f = w * bce                                              # alpha hoisted to wrapper

    if needs_mask:
        # Zero out rows past the true N (ragged last tile / clamped steps).
        # Must be applied BEFORE accumulation (OOB rows may hold garbage).
        p = pl.program_id(0)
        base = (p * tiles_per_part + j) * tm
        rows = base + jax.lax.broadcasted_iota(jnp.int32, f.shape, 0)
        f = jnp.where(rows < n_rows, f, 0.0)

    # Fold (tm, C) -> (acc_rows, C): sublane-aligned row-group slices summed
    # with a log-depth tree (independent add chains; pure vreg-wise VPU adds,
    # no reshape/relayout even when C is not a multiple of 128).
    groups = [f[k * acc_rows:(k + 1) * acc_rows, :] for k in range(tm // acc_rows)]
    while len(groups) > 1:
        nxt = [groups[i] + groups[i + 1] for i in range(0, len(groups) - 1, 2)]
        if len(groups) % 2:
            nxt.append(groups[-1])
        groups = nxt
    o_ref[...] = o_ref[...] + groups[0]


def focal_loss_multi_template(inputs, targets, *, alpha=1.0, gamma=2.0,
                              tm=None, num_partials=None, vmem_limit_bytes=None):
    """Pallas implementation of FocalLossMultiTemplate.forward for 2-D inputs."""
    assert inputs.shape == targets.shape and inputs.ndim == 2
    n, c = inputs.shape
    itemsize = inputs.dtype.itemsize

    if num_partials is None:
        num_partials = _default_num_partials()
    num_partials = max(1, int(num_partials))

    # --- row-tile selection: ~2 MiB f32 tile, >= ~4 grid steps per partial ---
    if tm is None:
        tm_bw = max(8, (2 << 20) // (4 * c))                  # ~2 MiB f32 tile
        tm_steps = max(512, pl.cdiv(n, num_partials * 4))     # >= ~4 steps / partial
        tm = min(tm_bw, tm_steps)
    tm = int(min(int(tm), _round_up(n, 8)))
    tm = max(8, (tm // 8) * 8)
    if tm >= 64:
        tm = (tm // 64) * 64
        acc_rows = 64          # 8 independent 8-row accumulator chains
    else:
        acc_rows = tm

    n_tiles = pl.cdiv(n, tm)
    num_partials = max(1, min(num_partials, n_tiles))
    tiles_per_part = pl.cdiv(n_tiles, num_partials)
    covered_rows = num_partials * tiles_per_part * tm
    needs_mask = covered_rows != n
    needs_clamp = num_partials * tiles_per_part > n_tiles

    def row_block(p, j):
        idx = p * tiles_per_part + j
        if needs_clamp:
            idx = jnp.minimum(idx, n_tiles - 1)   # stay in-bounds; rows masked in-kernel
        return (idx, 0)

    # --- VMEM budget: double-buffered input tiles (input dtype) + f32 temps ---
    if vmem_limit_bytes is None:
        in_tiles_bytes = 2 * 2 * tm * c * itemsize
        f32_temp_bytes = 6 * tm * c * 4
        out_bytes = 2 * num_partials * acc_rows * c * 4
        est = in_tiles_bytes + f32_temp_bytes + out_bytes + (4 << 20)
        vmem_limit_bytes = int(min(max(est, 16 << 20), 48 << 20))

    # Leading (partials) axis: explicit core-parallel only on multi-TC chips.
    lead_sem = (getattr(pltpu, "CORE_PARALLEL", "parallel")
                if num_partials > 1 else pltpu.ARBITRARY)
    dims = (lead_sem, pltpu.ARBITRARY)

    kernel = functools.partial(
        _focal_loss_kernel,
        gamma=float(gamma), n_rows=n, tm=tm, acc_rows=acc_rows,
        tiles_per_part=tiles_per_part, needs_mask=needs_mask,
    )

    partials = pl.pallas_call(
        kernel,
        out_shape=jax.ShapeDtypeStruct((num_partials, acc_rows, c), jnp.float32),
        grid_spec=pltpu.PrefetchScalarGridSpec(
            num_scalar_prefetch=0,
            grid=(num_partials, tiles_per_part),
            in_specs=[
                pl.BlockSpec((tm, c), row_block),
                pl.BlockSpec((tm, c), row_block),
            ],
            out_specs=pl.BlockSpec((None, acc_rows, c), lambda p, j: (p, 0, 0)),
        ),
        compiler_params=pltpu.CompilerParams(
            dimension_semantics=dims,
            vmem_limit_bytes=int(vmem_limit_bytes),
        ),
    )(inputs, targets)

    # Final tiny cross-lane/sublane reduction + alpha + mean(-1) in XLA.
    return partials.sum() * jnp.float32(float(alpha) / float(n))


def _reference(inputs, targets, alpha=1.0, gamma=2.0):
    x = inputs.astype(jnp.float32)
    t = targets.astype(jnp.float32)
    bce = jnp.maximum(x, 0.0) - x * t + jnp.log1p(jnp.exp(-jnp.abs(x)))
    pt = jnp.exp(-bce)
    f_loss = alpha * (1.0 - pt) ** gamma * bce
    return f_loss.sum(-1).mean(-1)


if __name__ == "__main__":
    # FocalLossMultiTemplate has no learned parameters; alpha/gamma are
    # deterministic constructor constants.
    alpha, gamma = 1.0, 2.0

    key = jax.random.PRNGKey(0)
    k1, k2, k3, k4 = jax.random.split(key, 4)

    # Case 1: (N, C) relation-proposal logits, ragged N, lane-aligned C.
    # Exercises multi-tile reduction + in-kernel row masking.
    n1, c1 = 200, 128
    x1 = jax.random.normal(k1, (n1, c1), dtype=jnp.float32) * 2.0
    t1 = (jax.random.uniform(k2, (n1, c1)) > 0.7).astype(jnp.float32)
    loss1 = jax.block_until_ready(
        focal_loss_multi_template(x1, t1, alpha=alpha, gamma=gamma))
    ref1 = _reference(x1, t1, alpha, gamma)
    assert jnp.allclose(loss1, ref1, rtol=2e-5, atol=1e-4), (loss1, ref1)

    # Case 2: small N, non-lane-multiple C (51 relation classes), bf16 inputs.
    # Exercises the C % 128 != 0 path and the bf16 ingest path.
    n2, c2 = 40, 51
    x2 = (jax.random.normal(k3, (n2, c2), dtype=jnp.float32) * 2.0).astype(jnp.bfloat16)
    t2 = (jax.random.uniform(k4, (n2, c2)) > 0.7).astype(jnp.bfloat16)
    loss2 = jax.block_until_ready(
        focal_loss_multi_template(x2, t2, alpha=alpha, gamma=gamma))
    ref2 = _reference(x2, t2, alpha, gamma)
    assert jnp.allclose(loss2, ref2, rtol=2e-3, atol=2e-3), (loss2, ref2)

    print("KERNEL_OK")
</pallas_src>

<mosaic_0001>
module attributes {stable_mosaic.version = 11 : i64} {
  func.func @_focal_loss_kernel(%arg0: i32, %arg1: i32, %arg2: memref<192x128xf32, #tpu.memory_space<vmem>>, %arg3: memref<192x128xf32, #tpu.memory_space<vmem>>, %arg4: memref<1x64x128xf32, #tpu.memory_space<vmem>>) attributes {dimension_semantics = [#tpu.dimension_semantics<arbitrary>, #tpu.dimension_semantics<arbitrary>], iteration_bounds = array<i64: 1, 2>, scalar_prefetch = 0 : i64, scratch_operands = 0 : i64, tpu.core_type = #tpu.core_type<tc>, window_params = [{transform_indices = @transform_0, window_bounds = array<i64: 192, 128>}, {transform_indices = @transform_1, window_bounds = array<i64: 192, 128>}, {transform_indices = @transform_2, window_bounds = array<i64: 1, 64, 128>}]} {
    %c0_i32 = arith.constant 0 : i32
    %0 = arith.cmpi eq, %arg1, %c0_i32 : i32
    %1 = arith.extui %0 : i1 to i32
    %c0_i32_0 = arith.constant 0 : i32
    %2 = arith.cmpi ne, %1, %c0_i32_0 : i32
    scf.if %2 {
      %cst_14 = arith.constant 0.000000e+00 : f32
      %43 = vector.broadcast %cst_14 : f32 to vector<64x128xf32>
      %c0_15 = arith.constant 0 : index
      %c0_16 = arith.constant 0 : index
      %c0_17 = arith.constant 0 : index
      %44 = vector.load %arg4[%c0_15, %c0_16, %c0_17] : memref<1x64x128xf32, #tpu.memory_space<vmem>>, vector<1x64x128xf32>
      %45 = vector.shape_cast %44 : vector<1x64x128xf32> to vector<64x128xf32>
      %46 = vector.shape_cast %43 : vector<64x128xf32> to vector<1x64x128xf32>
      tpu.vector_store %arg4[%c0_15, %c0_16, %c0_17], %46 {strides = array<i32>} : memref<1x64x128xf32, #tpu.memory_space<vmem>>, vector<1x64x128xf32>,
    } else {
    }
    %c0 = arith.constant 0 : index
    %c0_1 = arith.constant 0 : index
    %3 = vector.load %arg2[%c0, %c0_1] : memref<192x128xf32, #tpu.memory_space<vmem>>, vector<192x128xf32>
    %c0_2 = arith.constant 0 : index
    %c0_3 = arith.constant 0 : index
    %4 = vector.load %arg3[%c0_2, %c0_3] : memref<192x128xf32, #tpu.memory_space<vmem>>, vector<192x128xf32>
    %5 = math.absf %3 : vector<192x128xf32>
    %cst = arith.constant 0.000000e+00 : f32
    %6 = vector.broadcast %cst : f32 to vector<192x128xf32>
    %7 = arith.subf %6, %5 : vector<192x128xf32>
    %8 = math.exp %7 : vector<192x128xf32>
    %cst_4 = arith.constant 0.000000e+00 : f32
    %9 = vector.broadcast %cst_4 : f32 to vector<192x128xf32>
    %10 = arith.maximumf %3, %9 : vector<192x128xf32>
    %11 = arith.mulf %3, %4 : vector<192x128xf32>
    %12 = arith.subf %10, %11 : vector<192x128xf32>
    %13 = math.log1p %8 : vector<192x128xf32>
    %14 = arith.addf %12, %13 : vector<192x128xf32>
    %cst_5 = arith.constant 0.000000e+00 : f32
    %15 = vector.broadcast %cst_5 : f32 to vector<192x128xf32>
    %16 = arith.subf %15, %14 : vector<192x128xf32>
    %17 = math.exp %16 : vector<192x128xf32>
    %cst_6 = arith.constant 1.000000e+00 : f32
    %18 = vector.broadcast %cst_6 : f32 to vector<192x128xf32>
    %19 = arith.subf %18, %17 : vector<192x128xf32>
    %20 = arith.mulf %19, %19 : vector<192x128xf32>
    %21 = arith.mulf %20, %14 : vector<192x128xf32>
    %c2_i32 = arith.constant 2 : i32
    %22 = arith.muli %arg0, %c2_i32 : i32
    %23 = arith.addi %22, %arg1 : i32
    %c192_i32 = arith.constant 192 : i32
    %24 = arith.muli %23, %c192_i32 : i32
    %25 = tpu.iota {dimensions = array<i32: 0>} : vector<192x128xi32>
    %26 = vector.broadcast %24 : i32 to vector<192x128xi32>
    %27 = arith.addi %26, %25 : vector<192x128xi32>
    %c200_i32 = arith.constant 200 : i32
    %28 = vector.broadcast %c200_i32 : i32 to vector<192x128xi32>
    %29 = arith.cmpi slt, %27, %28 : vector<192x128xi32>
    %cst_7 = arith.constant 0.000000e+00 : f32
    %30 = vector.broadcast %cst_7 : f32 to vector<192x128xf32>
    %31 = arith.select %29, %21, %30 : vector<192x128xi1>, vector<192x128xf32>
    %32 = vector.extract_strided_slice %31 {offsets = [0, 0], sizes = [64, 128], strides = [1, 1]} : vector<192x128xf32> to vector<64x128xf32>
    %33 = vector.extract_strided_slice %31 {offsets = [64, 0], sizes = [64, 128], strides = [1, 1]} : vector<192x128xf32> to vector<64x128xf32>
    %34 = vector.extract_strided_slice %31 {offsets = [128, 0], sizes = [64, 128], strides = [1, 1]} : vector<192x128xf32> to vector<64x128xf32>
    %35 = arith.addf %32, %33 : vector<64x128xf32>
    %36 = arith.addf %35, %34 : vector<64x128xf32>
    %c0_8 = arith.constant 0 : index
    %c0_9 = arith.constant 0 : index
    %c0_10 = arith.constant 0 : index
    %37 = vector.load %arg4[%c0_8, %c0_9, %c0_10] : memref<1x64x128xf32, #tpu.memory_space<vmem>>, vector<1x64x128xf32>
    %38 = vector.shape_cast %37 : vector<1x64x128xf32> to vector<64x128xf32>
    %39 = arith.addf %38, %36 : vector<64x128xf32>
    %c0_11 = arith.constant 0 : index
    %c0_12 = arith.constant 0 : index
    %c0_13 = arith.constant 0 : index
    %40 = vector.load %arg4[%c0_11, %c0_12, %c0_13] : memref<1x64x128xf32, #tpu.memory_space<vmem>>, vector<1x64x128xf32>
    %41 = vector.shape_cast %40 : vector<1x64x128xf32> to vector<64x128xf32>
    %42 = vector.shape_cast %39 : vector<64x128xf32> to vector<1x64x128xf32>
    tpu.vector_store %arg4[%c0_11, %c0_12, %c0_13], %42 {strides = array<i32>} : memref<1x64x128xf32, #tpu.memory_space<vmem>>, vector<1x64x128xf32>,
    return
  }
  func.func @transform_0(%arg0: i32, %arg1: i32) -> (i32, i32) {
    %c2_i32 = arith.constant 2 : i32
    %0 = arith.muli %arg0, %c2_i32 : i32
    %1 = arith.addi %0, %arg1 : i32
    %c0_i32 = arith.constant 0 : i32
    %c0_i32_0 = arith.constant 0 : i32
    return %1, %c0_i32 : i32, i32
  }
  func.func @transform_1(%arg0: i32, %arg1: i32) -> (i32, i32) {
    %c2_i32 = arith.constant 2 : i32
    %0 = arith.muli %arg0, %c2_i32 : i32
    %1 = arith.addi %0, %arg1 : i32
    %c0_i32 = arith.constant 0 : i32
    %c0_i32_0 = arith.constant 0 : i32
    return %1, %c0_i32 : i32, i32
  }
  func.func @transform_2(%arg0: i32, %arg1: i32) -> (i32, i32, i32) {
    %c0_i32 = arith.constant 0 : i32
    %c0_i32_0 = arith.constant 0 : i32
    %c0_i32_1 = arith.constant 0 : i32
    return %arg0, %c0_i32, %c0_i32_0 : i32, i32, i32
  }
}

</mosaic_0001>

<llo_original>
// kernel: tpu_custom_call.1
$region0: #{tpu_custom_call.1}
  #allocation0 [shape = 'u32[]', space=smem, size = 0x4, offset = 0x4, fixed_abs, tag = 'smem constant byte address 0x4 - core index']
  #allocation1 [shape = 'u32[144,128]{1,0:T(1,128)}', space=vmem, size = 0x12000, scoped, tag = 'internal scratch']
  %s0 = inlined_call_operand.hbm [shape: f32[200,128], index: 0, kind: input, shape index: {}]
  %s1 = inlined_call_operand.hbm [shape: f32[200,128], index: 1, kind: input, shape index: {}]
  %s2 = inlined_call_operand.hbm [shape: f32[1,64,128], index: 2, kind: output, shape index: {}]
  %s3 = sld [smem:[#allocation0]]
  $region53: #{tpu_custom_call.1} parent=0
    _
  %s5 = ssub.s32 1, %s3
  %s6 = scalar_select 0, %s5, %s3
  $region1: #{tpu_custom_call.1} parent=0
    #allocation2 [shape = 'u8[196608]{0}', space=vmem, size = 0x30000, scoped, tag = 'input window, operand 0']
    #allocation3 [shape = 's32[2]{0}', space=sflag, size = 0x8, scoped, tag = 'scoped memory for tpu_custom_call.1']
    #allocation4 [shape = 's32[2]{0}', space=sflag, size = 0x8, scoped, tag = 'scoped memory for tpu_custom_call.1']
    #allocation5 [shape = 'u8[196608]{0}', space=vmem, size = 0x30000, scoped, tag = 'input window, operand 1']
    #allocation6 [shape = 's32[2]{0}', space=sflag, size = 0x8, scoped, tag = 'scoped memory for tpu_custom_call.1']
    #allocation7 [shape = 'u8[32768]{0}', space=vmem, size = 0x8000, scoped, tag = 'output window, operand 0, single buffered']
    %7 = vsyncpa [#allocation3], 0
    %s8 = scalar_lea.sflag [#allocation3], 1
    %9 = vsyncpa %s8, 0
    %10 = vsyncpa [#allocation6], 0
    %s11 = scalar_lea.sflag [#allocation6], 1
    %12 = vsyncpa %s11, 0
    %13 = vsyncpa [#allocation4], 0
    loop: start=0, step=1, limit=4
    $region2: #{tpu_custom_call.1} parent=1 // loop_pre_header
      _
    $region3: #{tpu_custom_call.1} parent=1 // loop_header
      %s15 = sphi 0, %s19
      %p16 = scmp.ge.s32.totalorder %s15, 4
      %s22 = sphi 0, %s34
      %s23 = sphi 0, %s30
      %s24 = sphi 0, %s22
      %s25 = sphi 0, %s23
      %s26 = sphi 0, %s24
      %s27 = sphi 0, %s25
      %s41 = sphi 0, %s43
      %s44 = sphi 0, %s41
      %s45 = sphi 0, %s44
      %s61 = sphi 0, %s45
      %s71 = sphi 0, %s73
      %s74 = sphi 0, %s71
      %s75 = sphi 0, %s74
      %s91 = sphi 0, %s75
      %s97 = sphi 0, %s99
      %s100 = sphi 0, %s97
      %s101 = sphi 0, %s100
      %s117 = sphi 0, %s101
    $region4: #{tpu_custom_call.1} parent=1 // loop_header_branch
      %18 = sbr.rel (%p16) target = $region8
    $region5: #{tpu_custom_call.1} parent=1 // loop_body
      %s20 = ssub.s32 %s15, 1
      %s21 = ssub.s32 %s15, 2
      %s28 = sadd.s32 1, %s23
      %p29 = scmp.ge.s32.totalorder %s28, 2
      %s30 = scalar_select %p29, 0, %s28
      %s31 = sadd.s32 1, %s22
      %s32 = scalar_select %p29, %s31, %s22
      %p33 = scmp.ge.s32.totalorder %s32, 1
      %s34 = scalar_select %p33, 0, %s32
      %s35 = smul.u32 %s22, 2
      %s36 = sadd.s32 %s35, %s23
      %s37 = smul.u32 %s34, 2
      %s38 = sadd.s32 %s37, %s30
      %s39 = ssub.s32 %s36, %s38
      %p40 = scmp.eq.s32.totalorder %s39, 0
      %s42 = sadd.s32 %s41, 1
      %s43 = scalar_select %p40, %s41, %s42
      %p46 = pneg %p40
      %p47 = scmp.eq.s32.totalorder %s15, 1
      %p48 = por %p46, %p47
      %p49 = scmp.ne.s32.totalorder %s41, %s44
      %p50 = scmp.eq.s32.totalorder %s15, 0
      %p51 = por %p49, %p50
      %p52 = scmp.ne.s32.totalorder %s41, %s44
      %p53 = scmp.eq.s32.totalorder %s20, 1
      %p54 = por %p52, %p53
      %p55 = scmp.ne.s32.totalorder %s44, %s45
      %p56 = scmp.eq.s32.totalorder %s20, 0
      %p57 = por %p55, %p56
      %p58 = scmp.ne.s32.totalorder %s44, %s45
      %p59 = scmp.eq.s32.totalorder %s21, 1
      %p60 = por %p58, %p59
      %p62 = scmp.ne.s32.totalorder %s45, %s61
      %p63 = scmp.eq.s32.totalorder %s21, 0
      %p64 = por %p62, %p63
      %s65 = smul.u32 %s22, 2
      %s66 = sadd.s32 %s65, %s23
      %s67 = smul.u32 %s34, 2
      %s68 = sadd.s32 %s67, %s30
      %s69 = ssub.s32 %s66, %s68
      %p70 = scmp.eq.s32.totalorder %s69, 0
      %s72 = sadd.s32 %s71, 1
      %s73 = scalar_select %p70, %s71, %s72
      %p76 = pneg %p70
      %p77 = scmp.eq.s32.totalorder %s15, 1
      %p78 = por %p76, %p77
      %p79 = scmp.ne.s32.totalorder %s71, %s74
      %p80 = scmp.eq.s32.totalorder %s15, 0
      %p81 = por %p79, %p80
      %p82 = scmp.ne.s32.totalorder %s71, %s74
      %p83 = scmp.eq.s32.totalorder %s20, 1
      %p84 = por %p82, %p83
      %p85 = scmp.ne.s32.totalorder %s74, %s75
      %p86 = scmp.eq.s32.totalorder %s20, 0
      %p87 = por %p85, %p86
      %p88 = scmp.ne.s32.totalorder %s74, %s75
      %p89 = scmp.eq.s32.totalorder %s21, 1
      %p90 = por %p88, %p89
      %p92 = scmp.ne.s32.totalorder %s75, %s91
      %p93 = scmp.eq.s32.totalorder %s21, 0
      %p94 = por %p92, %p93
      %s95 = ssub.s32 %s22, %s34
      %p96 = scmp.eq.s32.totalorder %s95, 0
      %s98 = sadd.s32 %s97, 1
      %s99 = scalar_select %p96, %s97, %s98
      %p102 = pneg %p96
      %p103 = scmp.eq.s32.totalorder %s15, 1
      %p104 = por %p102, %p103
      %p105 = scmp.ne.s32.totalorder %s97, %s100
      %p106 = scmp.eq.s32.totalorder %s15, 0
      %p107 = por %p105, %p106
      %p108 = scmp.ne.s32.totalorder %s97, %s100
      %p109 = scmp.eq.s32.totalorder %s20, 1
      %p110 = por %p108, %p109
      %p111 = scmp.ne.s32.totalorder %s100, %s101
      %p112 = scmp.eq.s32.totalorder %s20, 0
      %p113 = por %p111, %p112
      %p114 = scmp.ne.s32.totalorder %s100, %s101
      %p115 = scmp.eq.s32.totalorder %s21, 1
      %p116 = por %p114, %p115
      %p118 = scmp.ne.s32.totalorder %s101, %s117
      %p119 = scmp.eq.s32.totalorder %s21, 0
      %p120 = por %p118, %p119
      %p121 = scmp.le.s32.totalorder 1, %s15
      %p122 = scmp.lt.s32.totalorder %s15, 3
      %p123 = pnand %p121, %p122
      %p124 = pneg %p123
      // Predicated region
      $region9: #{tpu_custom_call.1} parent=5 // pred_check
        _
      $region10: #{tpu_custom_call.1} parent=5 // pred_check_branch
        %126 = sbr.rel (%p123) target = $region12
      $region11: #{tpu_custom_call.1} parent=5 // pred_region
        %s127 = ssub.s32 %s15, 1
      $region12: #{tpu_custom_call.1} parent=5 // pred_fallthru
        _
      %p128 = scmp.lt.s32.totalorder %s15, 2
      // Predicated region
      $region13: #{tpu_custom_call.1} parent=5 // pred_check
        %p129 = pneg %p128
      $region14: #{tpu_custom_call.1} parent=5 // pred_check_branch
        %131 = sbr.rel (%p129) target = $region16
      $region15: #{tpu_custom_call.1} parent=5 // pred_region
        // Predicated region
        $region17: #{tpu_custom_call.1} parent=15 // pred_check
          %p132 = pneg %p51
        $region18: #{tpu_custom_call.1} parent=15 // pred_check_branch
          %134 = sbr.rel (%p132) target = $region20
        $region19: #{tpu_custom_call.1} parent=15 // pred_region
          %s135 = sand.u32 %s41, 1
          %s136 = scalar_lea.sflag [#allocation3], %s135
          %s137 = sand.u32 %s41, 1
          %s138 = smul.addr %s137, 192
          %s139 = scalar_lea.vmem [#allocation2], %s138
          %s140 = smul.u32 %s22, 2
          %s141 = sadd.s32 %s140, %s23
          %s142 = smul.u32 24, %s141
          %s143 = ssub.s32 25, %s142
          %p144 = scmp.lt.s32.totalorder %s143, 24
          %s145 = scalar_select %p144, %s143, 24
          %s146 = smul.u32 128, %s145
          %s148 = ssub.s32 3072, %s146
          %149 = vsyncadd %s136, %s148
          %p150 = scmp.ne.s32.totalorder 0, %s146
          %s151 = smul.addr %s142, 128
          %s152 = scalar_lea.hbm %s0, %s151
          %s153 = smul.u32 8, %s145
          %s154 = sshll.u32 %s139, 4
          %s155 = int_to_ptr.vmem [resolvable:$true] %s154
          %s156 = sshll.u32 %s153, 4
          %160 = dma.hbm_to_vmem [thread:$0]  (%p150), %s152, %s156, %s155, %s136, 128, 128, 8
        $region20: #{tpu_custom_call.1} parent=15 // pred_fallthru
          _
        // Predicated region
        $region21: #{tpu_custom_call.1} parent=15 // pred_check
          %p161 = pneg %p81
        $region22: #{tpu_custom_call.1} parent=15 // pred_check_branch
          %163 = sbr.rel (%p161) target = $region24
        $region23: #{tpu_custom_call.1} parent=15 // pred_region
          %s164 = sand.u32 %s71, 1
          %s165 = scalar_lea.sflag [#allocation6], %s164
          %s166 = sand.u32 %s71, 1
          %s167 = smul.addr %s166, 192
          %s168 = scalar_lea.vmem [#allocation5], %s167
          %s169 = smul.u32 %s22, 2
          %s170 = sadd.s32 %s169, %s23
          %s171 = smul.u32 24, %s170
          %s172 = ssub.s32 25, %s171
          %p173 = scmp.lt.s32.totalorder %s172, 24
          %s174 = scalar_select %p173, %s172, 24
          %s175 = smul.u32 128, %s174
          %s177 = ssub.s32 3072, %s175
          %178 = vsyncadd %s165, %s177
          %p179 = scmp.ne.s32.totalorder 0, %s175
          %s180 = smul.addr %s171, 128
          %s181 = scalar_lea.hbm %s1, %s180
          %s182 = smul.u32 8, %s174
          %s183 = sshll.u32 %s168, 4
          %s184 = int_to_ptr.vmem [resolvable:$true] %s183
          %s185 = sshll.u32 %s182, 4
          %189 = dma.hbm_to_vmem [thread:$0]  (%p179), %s181, %s185, %s184, %s165, 128, 128, 8
        $region24: #{tpu_custom_call.1} parent=15 // pred_fallthru
          _
      $region16: #{tpu_custom_call.1} parent=5 // pred_fallthru
        _
      %p190 = scmp.le.s32.totalorder 1, %s15
      %p191 = scmp.lt.s32.totalorder %s15, 3
      %p192 = pnand %p190, %p191
      %p193 = pneg %p192
      // Predicated region
      $region25: #{tpu_custom_call.1} parent=5 // pred_check
        _
      $region26: #{tpu_custom_call.1} parent=5 // pred_check_branch
        %195 = sbr.rel (%p192) target = $region28
      $region27: #{tpu_custom_call.1} parent=5 // pred_region
        %s196 = ssub.s32 %s15, 1
        %s197 = sand.u32 %s44, 1
        %s198 = scalar_lea.sflag [#allocation3], %s197
        %s199 = sand.u32 %s44, 1
        %s200 = smul.addr %s199, 192
        %s201 = scalar_lea.vmem [#allocation2], %s200
        // Predicated region
        $region29: #{tpu_custom_call.1} parent=27 // pred_check
          %p202 = pneg %p57
        $region30: #{tpu_custom_call.1} parent=27 // pred_check_branch
          %204 = sbr.rel (%p202) target = $region32
        $region31: #{tpu_custom_call.1} parent=27 // pred_region
          %205 = dma.done %s198, 3072
        $region32: #{tpu_custom_call.1} parent=27 // pred_fallthru
          _
        %s206 = sand.u32 %s74, 1
        %s207 = scalar_lea.sflag [#allocation6], %s206
        %s208 = sand.u32 %s74, 1
        %s209 = smul.addr %s208, 192
        %s210 = scalar_lea.vmem [#allocation5], %s209
        // Predicated region
        $region33: #{tpu_custom_call.1} parent=27 // pred_check
          %p211 = pneg %p87
        $region34: #{tpu_custom_call.1} parent=27 // pred_check_branch
          %213 = sbr.rel (%p211) target = $region36
        $region35: #{tpu_custom_call.1} parent=27 // pred_region
          %214 = dma.done %s207, 3072
        $region36: #{tpu_custom_call.1} parent=27 // pred_fallthru
          _
        %s215 = sand.u32 %s44, 1
        %s216 = scalar_lea.sflag [#allocation3], %s215
        %s217 = sand.u32 %s44, 1
        %s218 = smul.addr %s217, 192
        %s219 = scalar_lea.vmem [#allocation2], %s218
        %p220 = pneg %p57
        %p221 = pneg %p54
        %s222 = sand.u32 %s74, 1
        %s223 = scalar_lea.sflag [#allocation6], %s222
        %s224 = sand.u32 %s74, 1
        %s225 = smul.addr %s224, 192
        %s226 = scalar_lea.vmem [#allocation5], %s225
        %p227 = pneg %p87
        %p228 = pneg %p84
        %p229 = pneg %p113
        %p230 = pneg %p110
        %s231 = smul.u32 %s24, 2
        %s232 = sadd.s32 %s231, %s25
        %s233 = smul.u32 24, %s232
        %s234 = ssub.s32 25, %s233
        %p235 = scmp.lt.s32.totalorder %s234, 24
        %s236 = scalar_select %p235, %s234, 24
        %s237 = smul.u32 128, %s236
        %s238 = smul.u32 %s24, 2
        %s239 = sadd.s32 %s238, %s25
        %s240 = smul.u32 24, %s239
        %s241 = ssub.s32 25, %s240
        %p242 = scmp.lt.s32.totalorder %s241, 24
        %s243 = scalar_select %p242, %s241, 24
        %s244 = smul.u32 128, %s243
        %p245 = scmp.eq.s32.totalorder %s25, 0
        // Predicated region
        $region37: #{tpu_custom_call.1} parent=27 // pred_check
          %p246 = pneg %p245
        $region38: #{tpu_custom_call.1} parent=27 // pred_check_branch
          %248 = sbr.rel (%p246) target = $region40
        $region39: #{tpu_custom_call.1} parent=27 // pred_region
          %249 = vst [vmem:[#allocation7] sm:$0xff] 0.0
          %250 = vst [vmem:[#allocation7 + $0x8] sm:$0xff] 0.0
          %251 = vst [vmem:[#allocation7 + $0x10] sm:$0xff] 0.0
          %252 = vst [vmem:[#allocation7 + $0x18] sm:$0xff] 0.0
          %253 = vst [vmem:[#allocation7 + $0x20] sm:$0xff] 0.0
          %254 = vst [vmem:[#allocation7 + $0x28] sm:$0xff] 0.0
          %255 = vst [vmem:[#allocation7 + $0x30] sm:$0xff] 0.0
          %256 = vst [vmem:[#allocation7 + $0x38] sm:$0xff] 0.0
        $region40: #{tpu_custom_call.1} parent=27 // pred_fallthru
          _
        %v257 = vld [vmem:[%s201] sm:$0xff]
        %v258 = vld [vmem:[%s201 + $0x8] sm:$0xff]
        %v259 = vld [vmem:[%s201 + $0x10] sm:$0xff]
        %v260 = vld [vmem:[%s201 + $0x18] sm:$0xff]
        %v261 = vld [vmem:[%s201 + $0x20] sm:$0xff]
        %v262 = vld [vmem:[%s201 + $0x28] sm:$0xff]
        %v263 = vld [vmem:[%s201 + $0x30] sm:$0xff]
        %v264 = vld [vmem:[%s201 + $0x38] sm:$0xff]
        %v265 = vld [vmem:[%s201 + $0x40] sm:$0xff]
        %v266 = vld [vmem:[%s201 + $0x48] sm:$0xff]
        %v267 = vld [vmem:[%s201 + $0x50] sm:$0xff]
        %v268 = vld [vmem:[%s201 + $0x58] sm:$0xff]
        %v269 = vld [vmem:[%s201 + $0x60] sm:$0xff]
        %v270 = vld [vmem:[%s201 + $0x68] sm:$0xff]
        %v271 = vld [vmem:[%s201 + $0x70] sm:$0xff]
        %v272 = vld [vmem:[%s201 + $0x78] sm:$0xff]
        %v273 = vld [vmem:[%s201 + $0x80] sm:$0xff]
        %v274 = vld [vmem:[%s201 + $0x88] sm:$0xff]
        %v275 = vld [vmem:[%s201 + $0x90] sm:$0xff]
        %v276 = vld [vmem:[%s201 + $0x98] sm:$0xff]
        %v277 = vld [vmem:[%s201 + $0xa0] sm:$0xff]
        %v278 = vld [vmem:[%s201 + $0xa8] sm:$0xff]
        %v279 = vld [vmem:[%s201 + $0xb0] sm:$0xff]
        %v280 = vld [vmem:[%s201 + $0xb8] sm:$0xff]
        %v281 = vld [vmem:[%s210] sm:$0xff]
        %v282 = vld [vmem:[%s210 + $0x8] sm:$0xff]
        %v283 = vld [vmem:[%s210 + $0x10] sm:$0xff]
        %v284 = vld [vmem:[%s210 + $0x18] sm:$0xff]
        %v285 = vld [vmem:[%s210 + $0x20] sm:$0xff]
        %v286 = vld [vmem:[%s210 + $0x28] sm:$0xff]
        %v287 = vld [vmem:[%s210 + $0x30] sm:$0xff]
        %v288 = vld [vmem:[%s210 + $0x38] sm:$0xff]
        %v289 = vld [vmem:[%s210 + $0x40] sm:$0xff]
        %v290 = vld [vmem:[%s210 + $0x48] sm:$0xff]
        %v291 = vld [vmem:[%s210 + $0x50] sm:$0xff]
        %v292 = vld [vmem:[%s210 + $0x58] sm:$0xff]
        %v293 = vld [vmem:[%s210 + $0x60] sm:$0xff]
        %v294 = vld [vmem:[%s210 + $0x68] sm:$0xff]
        %v295 = vld [vmem:[%s210 + $0x70] sm:$0xff]
        %v296 = vld [vmem:[%s210 + $0x78] sm:$0xff]
        %v297 = vld [vmem:[%s210 + $0x80] sm:$0xff]
        %v298 = vld [vmem:[%s210 + $0x88] sm:$0xff]
        %v299 = vld [vmem:[%s210 + $0x90] sm:$0xff]
        %v300 = vld [vmem:[%s210 + $0x98] sm:$0xff]
        %v301 = vld [vmem:[%s210 + $0xa0] sm:$0xff]
        %v302 = vld [vmem:[%s210 + $0xa8] sm:$0xff]
        %v303 = vld [vmem:[%s210 + $0xb0] sm:$0xff]
        %v304 = vld [vmem:[%s210 + $0xb8] sm:$0xff]
        %v305 = vand.u32 2147483647, %v257
        %v306 = vand.u32 2147483647, %v258
        %v307 = vand.u32 2147483647, %v259
        %v308 = vand.u32 2147483647, %v260
        %v309 = vand.u32 2147483647, %v261
        %v310 = vand.u32 2147483647, %v262
        %v311 = vand.u32 2147483647, %v263
        %v312 = vand.u32 2147483647, %v264
        %v313 = vand.u32 2147483647, %v265
        %v314 = vand.u32 2147483647, %v266
        %v315 = vand.u32 2147483647, %v267
        %v316 = vand.u32 2147483647, %v268
        %v317 = vand.u32 2147483647, %v269
        %v318 = vand.u32 2147483647, %v270
        %v319 = vand.u32 2147483647, %v271
        %v320 = vand.u32 2147483647, %v272
        %v321 = vand.u32 2147483647, %v273
        %v322 = vand.u32 2147483647, %v274
        %v323 = vand.u32 2147483647, %v275
        %v324 = vand.u32 2147483647, %v276
        %v325 = vand.u32 2147483647, %v277
        %v326 = vand.u32 2147483647, %v278
        %v327 = vand.u32 2147483647, %v279
        %v328 = vand.u32 2147483647, %v280
        %v329 = vsub.f32 0.0, %v305
        %v330 = vsub.f32 0.0, %v306
        %v331 = vsub.f32 0.0, %v307
        %v332 = vsub.f32 0.0, %v308
        %v333 = vsub.f32 0.0, %v309
        %v334 = vsub.f32 0.0, %v310
        %v335 = vsub.f32 0.0, %v311
        %v336 = vsub.f32 0.0, %v312
        %v337 = vsub.f32 0.0, %v313
        %v338 = vsub.f32 0.0, %v314
        %v339 = vsub.f32 0.0, %v315
        %v340 = vsub.f32 0.0, %v316
        %v341 = vsub.f32 0.0, %v317
        %v342 = vsub.f32 0.0, %v318
        %v343 = vsub.f32 0.0, %v319
        %v344 = vsub.f32 0.0, %v320
        %v345 = vsub.f32 0.0, %v321
        %v346 = vsub.f32 0.0, %v322
        %v347 = vsub.f32 0.0, %v323
        %v348 = vsub.f32 0.0, %v324
        %v349 = vsub.f32 0.0, %v325
        %v350 = vsub.f32 0.0, %v326
        %v351 = vsub.f32 0.0, %v327
        %v352 = vsub.f32 0.0, %v328
        %v353 = vmul.f32 %v329, 1.442695
        %v354 = vpow.pop %v353
        %v355 = vmul.f32 %v330, 1.442695
        %v356 = vpow.pop %v355
        %v357 = vmul.f32 %v331, 1.442695
        %v358 = vpow.pop %v357
        %v359 = vmul.f32 %v332, 1.442695
        %v360 = vpow.pop %v359
        %v361 = vmul.f32 %v333, 1.442695
        %v362 = vpow.pop %v361
        %v363 = vmul.f32 %v334, 1.442695
        %v364 = vpow.pop %v363
        %v365 = vmul.f32 %v335, 1.442695
        %v366 = vpow.pop %v365
        %v367 = vmul.f32 %v336, 1.442695
        %v368 = vpow.pop %v367
        %v369 = vmul.f32 %v337, 1.442695
        %v370 = vpow.pop %v369
        %v371 = vmul.f32 %v338, 1.442695
        %v372 = vpow.pop %v371
        %v373 = vmul.f32 %v339, 1.442695
        %v374 = vpow.pop %v373
        %v375 = vmul.f32 %v340, 1.442695
        %v376 = vpow.pop %v375
        %v377 = vmul.f32 %v341, 1.442695
        %v378 = vpow.pop %v377
        %v379 = vmul.f32 %v342, 1.442695
        %v380 = vpow.pop %v379
        %v381 = vmul.f32 %v343, 1.442695
        %v382 = vpow.pop %v381
        %v383 = vmul.f32 %v344, 1.442695
        %v384 = vpow.pop %v383
        %v385 = vmul.f32 %v345, 1.442695
        %v386 = vpow.pop %v385
        %v387 = vmul.f32 %v346, 1.442695
        %v388 = vpow.pop %v387
        %v389 = vmul.f32 %v347, 1.442695
        %v390 = vpow.pop %v389
        %v391 = vmul.f32 %v348, 1.442695
        %v392 = vpow.pop %v391
        %v393 = vmul.f32 %v349, 1.442695
        %v394 = vpow.pop %v393
        %v395 = vmul.f32 %v350, 1.442695
        %v396 = vpow.pop %v395
        %v397 = vmul.f32 %v351, 1.442695
        %v398 = vpow.pop %v397
        %v399 = vmul.f32 %v352, 1.442695
        %v400 = vpow.pop %v399
        %v401 = vmax.f32 %v257, 0.0
        %v402 = vmax.f32 %v258, 0.0
        %v403 = vmax.f32 %v259, 0.0
        %v404 = vmax.f32 %v260, 0.0
        %v405 = vmax.f32 %v261, 0.0
        %v406 = vmax.f32 %v262, 0.0
        %v407 = vmax.f32 %v263, 0.0
        %v408 = vmax.f32 %v264, 0.0
        %v409 = vmax.f32 %v265, 0.0
        %v410 = vmax.f32 %v266, 0.0
        %v411 = vmax.f32 %v267, 0.0
        %v412 = vmax.f32 %v268, 0.0
        %v413 = vmax.f32 %v269, 0.0
        %v414 = vmax.f32 %v270, 0.0
        %v415 = vmax.f32 %v271, 0.0
        %v416 = vmax.f32 %v272, 0.0
        %v417 = vmax.f32 %v273, 0.0
        %v418 = vmax.f32 %v274, 0.0
        %v419 = vmax.f32 %v275, 0.0
        %v420 = vmax.f32 %v276, 0.0
        %v421 = vmax.f32 %v277, 0.0
        %v422 = vmax.f32 %v278, 0.0
        %v423 = vmax.f32 %v279, 0.0
        %v424 = vmax.f32 %v280, 0.0
        %v425 = vmul.f32 %v257, %v281
        %v426 = vmul.f32 %v258, %v282
        %v427 = vmul.f32 %v259, %v283
        %v428 = vmul.f32 %v260, %v284
        %v429 = vmul.f32 %v261, %v285
        %v430 = vmul.f32 %v262, %v286
        %v431 = vmul.f32 %v263, %v287
        %v432 = vmul.f32 %v264, %v288
        %v433 = vmul.f32 %v265, %v289
        %v434 = vmul.f32 %v266, %v290
        %v435 = vmul.f32 %v267, %v291
        %v436 = vmul.f32 %v268, %v292
        %v437 = vmul.f32 %v269, %v293
        %v438 = vmul.f32 %v270, %v294
        %v439 = vmul.f32 %v271, %v295
        %v440 = vmul.f32 %v272, %v296
        %v441 = vmul.f32 %v273, %v297
        %v442 = vmul.f32 %v274, %v298
        %v443 = vmul.f32 %v275, %v299
        %v444 = vmul.f32 %v276, %v300
        %v445 = vmul.f32 %v277, %v301
        %v446 = vmul.f32 %v278, %v302
        %v447 = vmul.f32 %v279, %v303
        %v448 = vmul.f32 %v280, %v304
        %v449 = vsub.f32 %v401, %v425
        %v450 = vsub.f32 %v402, %v426
        %v451 = vsub.f32 %v403, %v427
        %v452 = vsub.f32 %v404, %v428
        %v453 = vsub.f32 %v405, %v429
        %v454 = vsub.f32 %v406, %v430
        %v455 = vsub.f32 %v407, %v431
        %v456 = vsub.f32 %v408, %v432
        %v457 = vsub.f32 %v409, %v433
        %v458 = vsub.f32 %v410, %v434
        %v459 = vsub.f32 %v411, %v435
        %v460 = vsub.f32 %v412, %v436
        %v461 = vsub.f32 %v413, %v437
        %v462 = vsub.f32 %v414, %v438
        %v463 = vsub.f32 %v415, %v439
        %v464 = vsub.f32 %v416, %v440
        %v465 = vsub.f32 %v417, %v441
        %v466 = vsub.f32 %v418, %v442
        %v467 = vsub.f32 %v419, %v443
        %v468 = vsub.f32 %v420, %v444
        %v469 = vsub.f32 %v421, %v445
        %v470 = vsub.f32 %v422, %v446
        %v471 = vsub.f32 %v423, %v447
        %v472 = vsub.f32 %v424, %v448
        %v473 = vadd.f32 %v354, 1.0
        %v474 = vlog2.pop %v473
        %v475 = vmul.f32 %v474, 0.6931472
        %v476 = vmul.f32 -0.5, %v354
        %v477 = vadd.f32 %v476, 1.0
        %v478 = vmul.f32 %v477, %v354
        %v479 = vand.u32 2147483647, %v354
        %vm480 = vcmp.lt.f32.partialorder %v479, 0.0004427343
        %v481 = vsel %vm480, %v478, %v475
        %v482 = vadd.f32 %v356, 1.0
        %v483 = vlog2.pop %v482
        %v484 = vmul.f32 %v483, 0.6931472
        %v485 = vmul.f32 -0.5, %v356
        %v486 = vadd.f32 %v485, 1.0
        %v487 = vmul.f32 %v486, %v356
        %v488 = vand.u32 2147483647, %v356
        %vm489 = vcmp.lt.f32.partialorder %v488, 0.0004427343
        %v490 = vsel %vm489, %v487, %v484
        %v491 = vadd.f32 %v358, 1.0
        %v492 = vlog2.pop %v491
        %v493 = vmul.f32 %v492, 0.6931472
        %v494 = vmul.f32 -0.5, %v358
        %v495 = vadd.f32 %v494, 1.0
        %v496 = vmul.f32 %v495, %v358
        %v497 = vand.u32 2147483647, %v358
        %vm498 = vcmp.lt.f32.partialorder %v497, 0.0004427343
        %v499 = vsel %vm498, %v496, %v493
        %v500 = vadd.f32 %v360, 1.0
        %v501 = vlog2.pop %v500
        %v502 = vmul.f32 %v501, 0.6931472
        %v503 = vmul.f32 -0.5, %v360
        %v504 = vadd.f32 %v503, 1.0
        %v505 = vmul.f32 %v504, %v360
        %v506 = vand.u32 2147483647, %v360
        %vm507 = vcmp.lt.f32.partialorder %v506, 0.0004427343
        %v508 = vsel %vm507, %v505, %v502
        %v509 = vadd.f32 %v362, 1.0
        %v510 = vlog2.pop %v509
        %v511 = vmul.f32 %v510, 0.6931472
        %v512 = vmul.f32 -0.5, %v362
        %v513 = vadd.f32 %v512, 1.0
        %v514 = vmul.f32 %v513, %v362
        %v515 = vand.u32 2147483647, %v362
        %vm516 = vcmp.lt.f32.partialorder %v515, 0.0004427343
        %v517 = vsel %vm516, %v514, %v511
        %v518 = vadd.f32 %v364, 1.0
        %v519 = vlog2.pop %v518
        %v520 = vmul.f32 %v519, 0.6931472
        %v521 = vmul.f32 -0.5, %v364
        %v522 = vadd.f32 %v521, 1.0
        %v523 = vmul.f32 %v522, %v364
        %v524 = vand.u32 2147483647, %v364
        %vm525 = vcmp.lt.f32.partialorder %v524, 0.0004427343
        %v526 = vsel %vm525, %v523, %v520
        %v527 = vadd.f32 %v366, 1.0
        %v528 = vlog2.pop %v527
        %v529 = vmul.f32 %v528, 0.6931472
        %v530 = vmul.f32 -0.5, %v366
        %v531 = vadd.f32 %v530, 1.0
        %v532 = vmul.f32 %v531, %v366
        %v533 = vand.u32 2147483647, %v366
        %vm534 = vcmp.lt.f32.partialorder %v533, 0.0004427343
        %v535 = vsel %vm534, %v532, %v529
        %v536 = vadd.f32 %v368, 1.0
        %v537 = vlog2.pop %v536
        %v538 = vmul.f32 %v537, 0.6931472
        %v539 = vmul.f32 -0.5, %v368
        %v540 = vadd.f32 %v539, 1.0
        %v541 = vmul.f32 %v540, %v368
        %v542 = vand.u32 2147483647, %v368
        %vm543 = vcmp.lt.f32.partialorder %v542, 0.0004427343
        %v544 = vsel %vm543, %v541, %v538
        %v545 = vadd.f32 %v370, 1.0
        %v546 = vlog2.pop %v545
        %v547 = vmul.f32 %v546, 0.6931472
        %v548 = vmul.f32 -0.5, %v370
        %v549 = vadd.f32 %v548, 1.0
        %v550 = vmul.f32 %v549, %v370
        %v551 = vand.u32 2147483647, %v370
        %vm552 = vcmp.lt.f32.partialorder %v551, 0.0004427343
        %v553 = vsel %vm552, %v550, %v547
        %v554 = vadd.f32 %v372, 1.0
        %v555 = vlog2.pop %v554
        %v556 = vmul.f32 %v555, 0.6931472
        %v557 = vmul.f32 -0.5, %v372
        %v558 = vadd.f32 %v557, 1.0
        %v559 = vmul.f32 %v558, %v372
        %v560 = vand.u32 2147483647, %v372
        %vm561 = vcmp.lt.f32.partialorder %v560, 0.0004427343
        %v562 = vsel %vm561, %v559, %v556
        %v563 = vadd.f32 %v374, 1.0
        %v564 = vlog2.pop %v563
        %v565 = vmul.f32 %v564, 0.6931472
        %v566 = vmul.f32 -0.5, %v374
        %v567 = vadd.f32 %v566, 1.0
        %v568 = vmul.f32 %v567, %v374
        %v569 = vand.u32 2147483647, %v374
        %vm570 = vcmp.lt.f32.partialorder %v569, 0.0004427343
        %v571 = vsel %vm570, %v568, %v565
        %v572 = vadd.f32 %v376, 1.0
        %v573 = vlog2.pop %v572
        %v574 = vmul.f32 %v573, 0.6931472
        %v575 = vmul.f32 -0.5, %v376
        %v576 = vadd.f32 %v575, 1.0
        %v577 = vmul.f32 %v576, %v376
        %v578 = vand.u32 2147483647, %v376
        %vm579 = vcmp.lt.f32.partialorder %v578, 0.0004427343
        %v580 = vsel %vm579, %v577, %v574
        %v581 = vadd.f32 %v378, 1.0
        %v582 = vlog2.pop %v581
        %v583 = vmul.f32 %v582, 0.6931472
        %v584 = vmul.f32 -0.5, %v378
        %v585 = vadd.f32 %v584, 1.0
        %v586 = vmul.f32 %v585, %v378
        %v587 = vand.u32 2147483647, %v378
        %vm588 = vcmp.lt.f32.partialorder %v587, 0.0004427343
        %v589 = vsel %vm588, %v586, %v583
        %v590 = vadd.f32 %v380, 1.0
        %v591 = vlog2.pop %v590
        %v592 = vmul.f32 %v591, 0.6931472
        %v593 = vmul.f32 -0.5, %v380
        %v594 = vadd.f32 %v593, 1.0
        %v595 = vmul.f32 %v594, %v380
        %v596 = vand.u32 2147483647, %v380
        %vm597 = vcmp.lt.f32.partialorder %v596, 0.0004427343
        %v598 = vsel %vm597, %v595, %v592
        %v599 = vadd.f32 %v382, 1.0
        %v600 = vlog2.pop %v599
        %v601 = vmul.f32 %v600, 0.6931472
        %v602 = vmul.f32 -0.5, %v382
        %v603 = vadd.f32 %v602, 1.0
        %v604 = vmul.f32 %v603, %v382
        %v605 = vand.u32 2147483647, %v382
        %vm606 = vcmp.lt.f32.partialorder %v605, 0.0004427343
        %v607 = vsel %vm606, %v604, %v601
        %v608 = vadd.f32 %v384, 1.0
        %v609 = vlog2.pop %v608
        %v610 = vmul.f32 %v609, 0.6931472
        %v611 = vmul.f32 -0.5, %v384
        %v612 = vadd.f32 %v611, 1.0
        %v613 = vmul.f32 %v612, %v384
        %v614 = vand.u32 2147483647, %v384
        %vm615 = vcmp.lt.f32.partialorder %v614, 0.0004427343
        %v616 = vsel %vm615, %v613, %v610
        %v617 = vadd.f32 %v386, 1.0
        %v618 = vlog2.pop %v617
        %v619 = vmul.f32 %v618, 0.6931472
        %v620 = vmul.f32 -0.5, %v386
        %v621 = vadd.f32 %v620, 1.0
        %v622 = vmul.f32 %v621, %v386
        %v623 = vand.u32 2147483647, %v386
        %vm624 = vcmp.lt.f32.partialorder %v623, 0.0004427343
        %v625 = vsel %vm624, %v622, %v619
        %v626 = vadd.f32 %v388, 1.0
        %v627 = vlog2.pop %v626
        %v628 = vmul.f32 %v627, 0.6931472
        %v629 = vmul.f32 -0.5, %v388
        %v630 = vadd.f32 %v629, 1.0
        %v631 = vmul.f32 %v630, %v388
        %v632 = vand.u32 2147483647, %v388
        %vm633 = vcmp.lt.f32.partialorder %v632, 0.0004427343
        %v634 = vsel %vm633, %v631, %v628
        %v635 = vadd.f32 %v390, 1.0
        %v636 = vlog2.pop %v635
        %v637 = vmul.f32 %v636, 0.6931472
        %v638 = vmul.f32 -0.5, %v390
        %v639 = vadd.f32 %v638, 1.0
        %v640 = vmul.f32 %v639, %v390
        %v641 = vand.u32 2147483647, %v390
        %vm642 = vcmp.lt.f32.partialorder %v641, 0.0004427343
        %v643 = vsel %vm642, %v640, %v637
        %v644 = vadd.f32 %v392, 1.0
        %v645 = vlog2.pop %v644
        %v646 = vmul.f32 %v645, 0.6931472
        %v647 = vmul.f32 -0.5, %v392
        %v648 = vadd.f32 %v647, 1.0
        %v649 = vmul.f32 %v648, %v392
        %v650 = vand.u32 2147483647, %v392
        %vm651 = vcmp.lt.f32.partialorder %v650, 0.0004427343
        %v652 = vsel %vm651, %v649, %v646
        %v653 = vadd.f32 %v394, 1.0
        %v654 = vlog2.pop %v653
        %v655 = vmul.f32 %v654, 0.6931472
        %v656 = vmul.f32 -0.5, %v394
        %v657 = vadd.f32 %v656, 1.0
        %v658 = vmul.f32 %v657, %v394
        %v659 = vand.u32 2147483647, %v394
        %vm660 = vcmp.lt.f32.partialorder %v659, 0.0004427343
        %v661 = vsel %vm660, %v658, %v655
        %v662 = vadd.f32 %v396, 1.0
        %v663 = vlog2.pop %v662
        %v664 = vmul.f32 %v663, 0.6931472
        %v665 = vmul.f32 -0.5, %v396
        %v666 = vadd.f32 %v665, 1.0
        %v667 = vmul.f32 %v666, %v396
        %v668 = vand.u32 2147483647, %v396
        %vm669 = vcmp.lt.f32.partialorder %v668, 0.0004427343
        %v670 = vsel %vm669, %v667, %v664
        %v671 = vadd.f32 %v398, 1.0
        %v672 = vlog2.pop %v671
        %v673 = vmul.f32 %v672, 0.6931472
        %v674 = vmul.f32 -0.5, %v398
        %v675 = vadd.f32 %v674, 1.0
        %v676 = vmul.f32 %v675, %v398
        %v677 = vand.u32 2147483647, %v398
        %vm678 = vcmp.lt.f32.partialorder %v677, 0.0004427343
        %v679 = vsel %vm678, %v676, %v673
        %v680 = vadd.f32 %v400, 1.0
        %v681 = vlog2.pop %v680
        %v682 = vmul.f32 %v681, 0.6931472
        %v683 = vmul.f32 -0.5, %v400
        %v684 = vadd.f32 %v683, 1.0
        %v685 = vmul.f32 %v684, %v400
        %v686 = vand.u32 2147483647, %v400
        %vm687 = vcmp.lt.f32.partialorder %v686, 0.0004427343
        %v688 = vsel %vm687, %v685, %v682
        %v689 = vadd.f32 %v449, %v481
        %v690 = vadd.f32 %v450, %v490
        %v691 = vadd.f32 %v451, %v499
        %v692 = vadd.f32 %v452, %v508
        %v693 = vadd.f32 %v453, %v517
        %v694 = vadd.f32 %v454, %v526
        %v695 = vadd.f32 %v455, %v535
        %v696 = vadd.f32 %v456, %v544
        %v697 = vadd.f32 %v457, %v553
        %v698 = vadd.f32 %v458, %v562
        %v699 = vadd.f32 %v459, %v571
        %v700 = vadd.f32 %v460, %v580
        %v701 = vadd.f32 %v461, %v589
        %v702 = vadd.f32 %v462, %v598
        %v703 = vadd.f32 %v463, %v607
        %v704 = vadd.f32 %v464, %v616
        %v705 = vadd.f32 %v465, %v625
        %v706 = vadd.f32 %v466, %v634
        %v707 = vadd.f32 %v467, %v643
        %v708 = vadd.f32 %v468, %v652
        %v709 = vadd.f32 %v469, %v661
        %v710 = vadd.f32 %v470, %v670
        %v711 = vadd.f32 %v471, %v679
        %v712 = vadd.f32 %v472, %v688
        %v713 = vsub.f32 0.0, %v689
        %v714 = vsub.f32 0.0, %v690
        %v715 = vsub.f32 0.0, %v691
        %v716 = vsub.f32 0.0, %v692
        %v717 = vsub.f32 0.0, %v693
        %v718 = vsub.f32 0.0, %v694
        %v719 = vsub.f32 0.0, %v695
        %v720 = vsub.f32 0.0, %v696
        %v721 = vsub.f32 0.0, %v697
        %v722 = vsub.f32 0.0, %v698
        %v723 = vsub.f32 0.0, %v699
        %v724 = vsub.f32 0.0, %v700
        %v725 = vsub.f32 0.0, %v701
        %v726 = vsub.f32 0.0, %v702
        %v727 = vsub.f32 0.0, %v703
        %v728 = vsub.f32 0.0, %v704
        %v729 = vsub.f32 0.0, %v705
        %v730 = vsub.f32 0.0, %v706
        %v731 = vsub.f32 0.0, %v707
        %v732 = vsub.f32 0.0, %v708
        %v733 = vsub.f32 0.0, %v709
        %v734 = vsub.f32 0.0, %v710
        %v735 = vsub.f32 0.0, %v711
        %v736 = vsub.f32 0.0, %v712
        %v737 = vmul.f32 %v713, 1.442695
        %v738 = vpow.pop %v737
        %v739 = vmul.f32 %v714, 1.442695
        %v740 = vpow.pop %v739
        %v741 = vmul.f32 %v715, 1.442695
        %v742 = vpow.pop %v741
        %v743 = vmul.f32 %v716, 1.442695
        %v744 = vpow.pop %v743
        %v745 = vmul.f32 %v717, 1.442695
        %v746 = vpow.pop %v745
        %v747 = vmul.f32 %v718, 1.442695
        %v748 = vpow.pop %v747
        %v749 = vmul.f32 %v719, 1.442695
        %v750 = vpow.pop %v749
        %v751 = vmul.f32 %v720, 1.442695
        %v752 = vpow.pop %v751
        %v753 = vmul.f32 %v721, 1.442695
        %v754 = vpow.pop %v753
        %v755 = vmul.f32 %v722, 1.442695
        %v756 = vpow.pop %v755
        %v757 = vmul.f32 %v723, 1.442695
        %v758 = vpow.pop %v757
        %v759 = vmul.f32 %v724, 1.442695
        %v760 = vpow.pop %v759
        %v761 = vmul.f32 %v725, 1.442695
        %v762 = vpow.pop %v761
        %v763 = vmul.f32 %v726, 1.442695
        %v764 = vpow.pop %v763
        %v765 = vmul.f32 %v727, 1.442695
        %v766 = vpow.pop %v765
        %v767 = vmul.f32 %v728, 1.442695
        %v768 = vpow.pop %v767
        %v769 = vmul.f32 %v729, 1.442695
        %v770 = vpow.pop %v769
        %v771 = vmul.f32 %v730, 1.442695
        %v772 = vpow.pop %v771
        %v773 = vmul.f32 %v731, 1.442695
        %v774 = vpow.pop %v773
        %v775 = vmul.f32 %v732, 1.442695
        %v776 = vpow.pop %v775
        %v777 = vmul.f32 %v733, 1.442695
        %v778 = vpow.pop %v777
        %v779 = vmul.f32 %v734, 1.442695
        %v780 = vpow.pop %v779
        %v781 = vmul.f32 %v735, 1.442695
        %v782 = vpow.pop %v781
        %v783 = vmul.f32 %v736, 1.442695
        %v784 = vpow.pop %v783
        %v785 = vsub.f32 1.0, %v738
        %v786 = vsub.f32 1.0, %v740
        %v787 = vsub.f32 1.0, %v742
        %v788 = vsub.f32 1.0, %v744
        %v789 = vsub.f32 1.0, %v746
        %v790 = vsub.f32 1.0, %v748
        %v791 = vsub.f32 1.0, %v750
        %v792 = vsub.f32 1.0, %v752
        %v793 = vsub.f32 1.0, %v754
        %v794 = vsub.f32 1.0, %v756
        %v795 = vsub.f32 1.0, %v758
        %v796 = vsub.f32 1.0, %v760
        %v797 = vsub.f32 1.0, %v762
        %v798 = vsub.f32 1.0, %v764
        %v799 = vsub.f32 1.0, %v766
        %v800 = vsub.f32 1.0, %v768
        %v801 = vsub.f32 1.0, %v770
        %v802 = vsub.f32 1.0, %v772
        %v803 = vsub.f32 1.0, %v774
        %v804 = vsub.f32 1.0, %v776
        %v805 = vsub.f32 1.0, %v778
        %v806 = vsub.f32 1.0, %v780
        %v807 = vsub.f32 1.0, %v782
        %v808 = vsub.f32 1.0, %v784
        %v809 = vmul.f32 %v785, %v785
        %v810 = vmul.f32 %v786, %v786
        %v811 = vmul.f32 %v787, %v787
        %v812 = vmul.f32 %v788, %v788
        %v813 = vmul.f32 %v789, %v789
        %v814 = vmul.f32 %v790, %v790
        %v815 = vmul.f32 %v791, %v791
        %v816 = vmul.f32 %v792, %v792
        %v817 = vmul.f32 %v793, %v793
        %v818 = vmul.f32 %v794, %v794
        %v819 = vmul.f32 %v795, %v795
        %v820 = vmul.f32 %v796, %v796
        %v821 = vmul.f32 %v797, %v797
        %v822 = vmul.f32 %v798, %v798
        %v823 = vmul.f32 %v799, %v799
        %v824 = vmul.f32 %v800, %v800
        %v825 = vmul.f32 %v801, %v801
        %v826 = vmul.f32 %v802, %v802
        %v827 = vmul.f32 %v803, %v803
        %v828 = vmul.f32 %v804, %v804
        %v829 = vmul.f32 %v805, %v805
        %v830 = vmul.f32 %v806, %v806
        %v831 = vmul.f32 %v807, %v807
        %v832 = vmul.f32 %v808, %v808
        %v833 = vmul.f32 %v809, %v689
        %v834 = vmul.f32 %v810, %v690
        %v835 = vmul.f32 %v811, %v691
        %v836 = vmul.f32 %v812, %v692
        %v837 = vmul.f32 %v813, %v693
        %v838 = vmul.f32 %v814, %v694
        %v839 = vmul.f32 %v815, %v695
        %v840 = vmul.f32 %v816, %v696
        %v841 = vmul.f32 %v817, %v697
        %v842 = vmul.f32 %v818, %v698
        %v843 = vmul.f32 %v819, %v699
        %v844 = vmul.f32 %v820, %v700
        %v845 = vmul.f32 %v821, %v701
        %v846 = vmul.f32 %v822, %v702
        %v847 = vmul.f32 %v823, %v703
        %v848 = vmul.f32 %v824, %v704
        %v849 = vmul.f32 %v825, %v705
        %v850 = vmul.f32 %v826, %v706
        %v851 = vmul.f32 %v827, %v707
        %v852 = vmul.f32 %v828, %v708
        %v853 = vmul.f32 %v829, %v709
        %v854 = vmul.f32 %v830, %v710
        %v855 = vmul.f32 %v831, %v711
        %v856 = vmul.f32 %v832, %v712
        %s857 = smul.u32 %s24, 2
        %s858 = sadd.s32 %s857, %s25
        %s859 = smul.u32 %s858, 192
        %v860 = vlaneseq
        %v861 = vshrl.u32 %v860, 7
        %v862 = vadd.s32 %v861, 8
        %v863 = vadd.s32 %v861, 16
        %v864 = vadd.s32 %v861, 24
        %v865 = vadd.s32 %v861, 32
        %v866 = vadd.s32 %v861, 40
        %v867 = vadd.s32 %v861, 48
        %v868 = vadd.s32 %v861, 56
        %v869 = vadd.s32 %v861, 64
        %v870 = vadd.s32 %v861, 72
        %v871 = vadd.s32 %v861, 80
        %v872 = vadd.s32 %v861, 88
        %v873 = vadd.s32 %v861, 96
        %v874 = vadd.s32 %v861, 104
        %v875 = vadd.s32 %v861, 112
        %v876 = vadd.s32 %v861, 120
        %v877 = vadd.s32 %v861, 128
        %v878 = vadd.s32 %v861, 136
        %v879 = vadd.s32 %v861, 144
        %v880 = vadd.s32 %v861, 152
        %v881 = vadd.s32 %v861, 160
        %v882 = vadd.s32 %v861, 168
        %v883 = vadd.s32 %v861, 176
        %v884 = vadd.s32 %v861, 184
        %v885 = vstv %s859
        %v886 = vadd.s32 %v885, %v861
        %v887 = vadd.s32 %v885, %v862
        %v888 = vadd.s32 %v885, %v863
        %v889 = vadd.s32 %v885, %v864
        %v890 = vadd.s32 %v885, %v865
        %v891 = vadd.s32 %v885, %v866
        %v892 = vadd.s32 %v885, %v867
        %v893 = vadd.s32 %v885, %v868
        %v894 = vadd.s32 %v885, %v869
        %v895 = vadd.s32 %v885, %v870
        %v896 = vadd.s32 %v885, %v871
        %v897 = vadd.s32 %v885, %v872
        %v898 = vadd.s32 %v885, %v873
        %v899 = vadd.s32 %v885, %v874
        %v900 = vadd.s32 %v885, %v875
        %v901 = vadd.s32 %v885, %v876
        %v902 = vadd.s32 %v885, %v877
        %v903 = vadd.s32 %v885, %v878
        %v904 = vadd.s32 %v885, %v879
        %v905 = vadd.s32 %v885, %v880
        %v906 = vadd.s32 %v885, %v881
        %v907 = vadd.s32 %v885, %v882
        %v908 = vadd.s32 %v885, %v883
        %v909 = vadd.s32 %v885, %v884
        %vm910 = vcmp.lt.s32.totalorder %v886, 200
        %vm911 = vcmp.lt.s32.totalorder %v887, 200
        %vm912 = vcmp.lt.s32.totalorder %v888, 200
        %vm913 = vcmp.lt.s32.totalorder %v889, 200
        %vm914 = vcmp.lt.s32.totalorder %v890, 200
        %vm915 = vcmp.lt.s32.totalorder %v891, 200
        %vm916 = vcmp.lt.s32.totalorder %v892, 200
        %vm917 = vcmp.lt.s32.totalorder %v893, 200
        %vm918 = vcmp.lt.s32.totalorder %v894, 200
        %vm919 = vcmp.lt.s32.totalorder %v895, 200
        %vm920 = vcmp.lt.s32.totalorder %v896, 200
        %vm921 = vcmp.lt.s32.totalorder %v897, 200
        %vm922 = vcmp.lt.s32.totalorder %v898, 200
        %vm923 = vcmp.lt.s32.totalorder %v899, 200
        %vm924 = vcmp.lt.s32.totalorder %v900, 200
        %vm925 = vcmp.lt.s32.totalorder %v901, 200
        %vm926 = vcmp.lt.s32.totalorder %v902, 200
        %vm927 = vcmp.lt.s32.totalorder %v903, 200
        %vm928 = vcmp.lt.s32.totalorder %v904, 200
        %vm929 = vcmp.lt.s32.totalorder %v905, 200
        %vm930 = vcmp.lt.s32.totalorder %v906, 200
        %vm931 = vcmp.lt.s32.totalorder %v907, 200
        %vm932 = vcmp.lt.s32.totalorder %v908, 200
        %vm933 = vcmp.lt.s32.totalorder %v909, 200
        %v934 = vsel %vm910, %v833, 0.0
        %v935 = vsel %vm911, %v834, 0.0
        %v936 = vsel %vm912, %v835, 0.0
        %v937 = vsel %vm913, %v836, 0.0
        %v938 = vsel %vm914, %v837, 0.0
        %v939 = vsel %vm915, %v838, 0.0
        %v940 = vsel %vm916, %v839, 0.0
        %v941 = vsel %vm917, %v840, 0.0
        %v942 = vsel %vm918, %v841, 0.0
        %v943 = vsel %vm919, %v842, 0.0
        %v944 = vsel %vm920, %v843, 0.0
        %v945 = vsel %vm921, %v844, 0.0
        %v946 = vsel %vm922, %v845, 0.0
        %v947 = vsel %vm923, %v846, 0.0
        %v948 = vsel %vm924, %v847, 0.0
        %v949 = vsel %vm925, %v848, 0.0
        %v950 = vsel %vm926, %v849, 0.0
        %v951 = vsel %vm927, %v850, 0.0
        %v952 = vsel %vm928, %v851, 0.0
        %v953 = vsel %vm929, %v852, 0.0
        %v954 = vsel %vm930, %v853, 0.0
        %v955 = vsel %vm931, %v854, 0.0
        %v956 = vsel %vm932, %v855, 0.0
        %v957 = vsel %vm933, %v856, 0.0
        %v958 = vadd.f32 %v934, %v942
        %v959 = vadd.f32 %v935, %v943
        %v960 = vadd.f32 %v936, %v944
        %v961 = vadd.f32 %v937, %v945
        %v962 = vadd.f32 %v938, %v946
        %v963 = vadd.f32 %v939, %v947
        %v964 = vadd.f32 %v940, %v948
        %v965 = vadd.f32 %v941, %v949
        %v966 = vadd.f32 %v958, %v950
        %v967 = vadd.f32 %v959, %v951
        %v968 = vadd.f32 %v960, %v952
        %v969 = vadd.f32 %v961, %v953
        %v970 = vadd.f32 %v962, %v954
        %v971 = vadd.f32 %v963, %v955
        %v972 = vadd.f32 %v964, %v956
        %v973 = vadd.f32 %v965, %v957
        %v974 = vld [vmem:[#allocation7] sm:$0xff]
        %v975 = vld [vmem:[#allocation7 + $0x8] sm:$0xff]
        %v976 = vld [vmem:[#allocation7 + $0x10] sm:$0xff]
        %v977 = vld [vmem:[#allocation7 + $0x18] sm:$0xff]
        %v978 = vld [vmem:[#allocation7 + $0x20] sm:$0xff]
        %v979 = vld [vmem:[#allocation7 + $0x28] sm:$0xff]
        %v980 = vld [vmem:[#allocation7 + $0x30] sm:$0xff]
        %v981 = vld [vmem:[#allocation7 + $0x38] sm:$0xff]
        %v982 = vadd.f32 %v974, %v966
        %v983 = vadd.f32 %v975, %v967
        %v984 = vadd.f32 %v976, %v968
        %v985 = vadd.f32 %v977, %v969
        %v986 = vadd.f32 %v978, %v970
        %v987 = vadd.f32 %v979, %v971
        %v988 = vadd.f32 %v980, %v972
        %v989 = vadd.f32 %v981, %v973
        %990 = vst [vmem:[#allocation7] sm:$0xff] %v982
        %991 = vst [vmem:[#allocation7 + $0x8] sm:$0xff] %v983
        %992 = vst [vmem:[#allocation7 + $0x10] sm:$0xff] %v984
        %993 = vst [vmem:[#allocation7 + $0x18] sm:$0xff] %v985
        %994 = vst [vmem:[#allocation7 + $0x20] sm:$0xff] %v986
        %995 = vst [vmem:[#allocation7 + $0x28] sm:$0xff] %v987
        %996 = vst [vmem:[#allocation7 + $0x30] sm:$0xff] %v988
        %997 = vst [vmem:[#allocation7 + $0x38] sm:$0xff] %v989
        // Predicated region
        $region41: #{tpu_custom_call.1} parent=27 // pred_check
          %p998 = pneg %p110
        $region42: #{tpu_custom_call.1} parent=27 // pred_check_branch
          %1000 = sbr.rel (%p998) target = $region44
        $region43: #{tpu_custom_call.1} parent=27 // pred_region
          %s1002 = ssub.s32 1024, 1024
          %1003 = vsyncadd [#allocation4], %s1002
          %s1004 = smul.addr %s24, 8
          %s1005 = smul.addr %s1004, 128
          %s1006 = scalar_lea.hbm %s2, %s1005
          %s1007 = sshll.u32 [#allocation7], 4
          %s1008 = int_to_ptr.vmem [resolvable:$true] %s1007
          %1013 = dma.vmem_to_hbm [thread:$0]  %s1008, 1024, %s1006, [#allocation4], 128, 128, 8
        $region44: #{tpu_custom_call.1} parent=27 // pred_fallthru
          _
        // Predicated region
        $region45: #{tpu_custom_call.1} parent=27 // pred_check
          %p1014 = pneg %p110
        $region46: #{tpu_custom_call.1} parent=27 // pred_check_branch
          %1016 = sbr.rel (%p1014) target = $region48
        $region47: #{tpu_custom_call.1} parent=27 // pred_region
          %1017 = dma.done [#allocation4], 1024
        $region48: #{tpu_custom_call.1} parent=27 // pred_fallthru
          _
      $region28: #{tpu_custom_call.1} parent=5 // pred_fallthru
        _
      %p1018 = scmp.le.s32.totalorder 2, %s15
      // Predicated region
      $region49: #{tpu_custom_call.1} parent=5 // pred_check
        %p1019 = pneg %p1018
      $region50: #{tpu_custom_call.1} parent=5 // pred_check_branch
        %1021 = sbr.rel (%p1019) target = $region52
      $region51: #{tpu_custom_call.1} parent=5 // pred_region
        %s1022 = ssub.s32 %s15, 2
      $region52: #{tpu_custom_call.1} parent=5 // pred_fallthru
        _
    $region6: #{tpu_custom_call.1} parent=1 // loop_footer
      %s19 = sadd.s32 1, %s15
    $region7: #{tpu_custom_call.1} parent=1 // loop_footer_branch
      %14 = sbr.rel target = $region3
    $region8: #{tpu_custom_call.1} parent=1 // loop_exit
      _
    %1023 = vsyncpa [#allocation3], 1
    %s1024 = scalar_lea.sflag [#allocation3], 1
    %1025 = vsyncpa %s1024, 1
    %1026 = vsyncpa [#allocation6], 1
    %s1027 = scalar_lea.sflag [#allocation6], 1
    %1028 = vsyncpa %s1027, 1
    %1029 = vsyncpa [#allocation4], 1
    %s1030 = scalar_lea.sflag [#allocation4], 1
    %1031 = vsyncpa %s1030, 1

</llo_original>
